<compile_context>
chip_gen: v6e
topology: v6e:2x2x1
jax: 0.10.0
libtpu: 0.0.40
codegen_flags: <defaults>
</compile_context>

<pallas_src>
import functools

import jax
import jax.numpy as jnp
from jax.experimental import pallas as pl
from jax.experimental.pallas import tpu as pltpu  # noqa: F401  (TPU backend)

# ----------------------------- configuration --------------------------------
D_MODEL = 32
N_PERSONS = 4     # args.N
J_JOINTS = 4      # args.J
BATCH = 2


# ----------------------------- Pallas kernel --------------------------------
def _joint_to_person_kernel(x_ref, w1_ref, b1_ref, w2_ref, b2_ref, o_ref):
    """Fused Linear -> ReLU -> Linear.

    x_ref  : (B*N, J*d)  lane-dense (J*d == 128)
    w1_ref : (J*d, d),  b1_ref : (1, d)
    w2_ref : (d, d),    b2_ref : (1, d)
    o_ref  : (B*N, d)
    """
    x = x_ref[...]
    h = jnp.dot(x, w1_ref[...], preferred_element_type=jnp.float32) + b1_ref[...]
    h = jnp.maximum(h, 0.0)                                   # ReLU (VPU)
    y = jnp.dot(h, w2_ref[...], preferred_element_type=jnp.float32) + b2_ref[...]
    o_ref[...] = y


def joint_to_person(params, joint_feats):
    """joint_feats: (B, N*J, d) -> (B, N, d), matching Joint_To_Person.forward."""
    B = joint_feats.shape[0]
    N, J, d = N_PERSONS, J_JOINTS, D_MODEL
    M = B * N
    K = J * d

    # torch .view(-1, N, J, d).flatten(2, 3) is a pure row-major reshape:
    # (B, N*J, d) -> (B*N, J*d). Free in the wrapper, presents a lane-dense slab.
    x = joint_feats.reshape(M, K)

    w1 = params["w1"]
    b1 = params["b1"].reshape(1, d)
    w2 = params["w2"]
    b2 = params["b2"].reshape(1, d)

    out = pl.pallas_call(
        _joint_to_person_kernel,
        out_shape=jax.ShapeDtypeStruct((M, d), jnp.float32),
        grid=(1,),
        in_specs=[
            pl.BlockSpec((M, K), lambda i: (0, 0)),   # x       (8, 128)
            pl.BlockSpec((K, d), lambda i: (0, 0)),   # w1      (128, 32)
            pl.BlockSpec((1, d), lambda i: (0, 0)),   # b1      (1, 32)
            pl.BlockSpec((d, d), lambda i: (0, 0)),   # w2      (32, 32)
            pl.BlockSpec((1, d), lambda i: (0, 0)),   # b2      (1, 32)
        ],
        out_specs=pl.BlockSpec((M, d), lambda i: (0, 0)),
    )(x, w1, b1, w2, b2)

    return out.reshape(B, N, d)


# ----------------------------- reference & init ------------------------------
def joint_to_person_ref(params, joint_feats):
    """Pure-JAX reference (same math, no Pallas)."""
    B = joint_feats.shape[0]
    x = joint_feats.reshape(B, N_PERSONS, J_JOINTS * D_MODEL)
    h = jnp.maximum(jnp.dot(x, params["w1"]) + params["b1"], 0.0)
    return jnp.dot(h, params["w2"]) + params["b2"]


def _init_linear(key, fan_in, fan_out):
    # torch.nn.Linear default: U(-1/sqrt(fan_in), 1/sqrt(fan_in)) for W and b.
    k1, k2 = jax.random.split(key)
    s = 1.0 / float(fan_in) ** 0.5
    w = jax.random.uniform(k1, (fan_in, fan_out), jnp.float32, -s, s)
    b = jax.random.uniform(k2, (fan_out,), jnp.float32, -s, s)
    return w, b


def init_joint_to_person(key):
    k1, k2 = jax.random.split(key)
    w1, b1 = _init_linear(k1, J_JOINTS * D_MODEL, D_MODEL)   # Linear(J*d, d)
    w2, b2 = _init_linear(k2, D_MODEL, D_MODEL)              # Linear(d, d)
    return dict(w1=w1, b1=b1, w2=w2, b2=b2)


# ----------------------------- main ------------------------------------------
if __name__ == "__main__":
    key = jax.random.PRNGKey(0)
    kparam, kx = jax.random.split(key)

    params = init_joint_to_person(kparam)
    joint_feats = jax.random.normal(
        kx, (BATCH, N_PERSONS * J_JOINTS, D_MODEL), jnp.float32)

    fwd = jax.jit(functools.partial(joint_to_person, params))
    out = fwd(joint_feats)
    out = jax.block_until_ready(out)

    # sanity checks
    assert out.shape == (BATCH, N_PERSONS, D_MODEL)
    assert bool(jnp.all(jnp.isfinite(out)))

    # correctness vs pure-JAX reference (loose tol for MXU f32 pass rounding)
    ref = joint_to_person_ref(params, joint_feats)
    assert jnp.allclose(out, ref, rtol=1e-2, atol=1e-2)

    print("KERNEL_OK")
</pallas_src>

<mosaic_0001>
module attributes {stable_mosaic.version = 11 : i64} {
  func.func @_joint_to_person_kernel(%arg0: i32, %arg1: memref<8x128xf32, #tpu.memory_space<vmem>>, %arg2: memref<128x32xf32, #tpu.memory_space<vmem>>, %arg3: memref<1x32xf32, #tpu.memory_space<vmem>>, %arg4: memref<32x32xf32, #tpu.memory_space<vmem>>, %arg5: memref<1x32xf32, #tpu.memory_space<vmem>>, %arg6: memref<8x32xf32, #tpu.memory_space<vmem>>) attributes {dimension_semantics = [#tpu.dimension_semantics<arbitrary>], iteration_bounds = array<i64: 1>, scalar_prefetch = 0 : i64, scratch_operands = 0 : i64, tpu.core_type = #tpu.core_type<tc>, window_params = [{pipeline_mode = #tpu.pipeline_mode<synchronous>, transform_indices = @transform_0, window_bounds = array<i64: 8, 128>}, {pipeline_mode = #tpu.pipeline_mode<synchronous>, transform_indices = @transform_1, window_bounds = array<i64: 128, 32>}, {pipeline_mode = #tpu.pipeline_mode<synchronous>, transform_indices = @transform_2, window_bounds = array<i64: 1, 32>}, {pipeline_mode = #tpu.pipeline_mode<synchronous>, transform_indices = @transform_3, window_bounds = array<i64: 32, 32>}, {pipeline_mode = #tpu.pipeline_mode<synchronous>, transform_indices = @transform_4, window_bounds = array<i64: 1, 32>}, {pipeline_mode = #tpu.pipeline_mode<synchronous>, transform_indices = @transform_5, window_bounds = array<i64: 8, 32>}]} {
    %c0 = arith.constant 0 : index
    %c0_0 = arith.constant 0 : index
    %0 = vector.load %arg1[%c0, %c0_0] : memref<8x128xf32, #tpu.memory_space<vmem>>, vector<8x128xf32>
    %c0_1 = arith.constant 0 : index
    %c0_2 = arith.constant 0 : index
    %1 = vector.load %arg2[%c0_1, %c0_2] : memref<128x32xf32, #tpu.memory_space<vmem>>, vector<128x32xf32>
    %cst = arith.constant dense<0.000000e+00> : vector<8x32xf32>
    %2 = tpu.matmul %0, %1, %cst {dimension_numbers = #tpu.dot_dimension_numbers<[1], [0], [0], [1], [0, 0, 1, 1], [], []>} : vector<8x128xf32>, vector<128x32xf32>, vector<8x32xf32> -> vector<8x32xf32>
    %c0_3 = arith.constant 0 : index
    %c0_4 = arith.constant 0 : index
    %3 = vector.load %arg3[%c0_3, %c0_4] : memref<1x32xf32, #tpu.memory_space<vmem>>, vector<1x32xf32>
    %4 = vector.broadcast %3 : vector<1x32xf32> to vector<8x32xf32>
    %5 = arith.addf %2, %4 : vector<8x32xf32>
    %cst_5 = arith.constant 0.000000e+00 : f32
    %6 = vector.broadcast %cst_5 : f32 to vector<8x32xf32>
    %7 = arith.maximumf %5, %6 : vector<8x32xf32>
    %c0_6 = arith.constant 0 : index
    %c0_7 = arith.constant 0 : index
    %8 = vector.load %arg4[%c0_6, %c0_7] : memref<32x32xf32, #tpu.memory_space<vmem>>, vector<32x32xf32>
    %cst_8 = arith.constant dense<0.000000e+00> : vector<8x32xf32>
    %9 = tpu.matmul %7, %8, %cst_8 {dimension_numbers = #tpu.dot_dimension_numbers<[1], [0], [0], [1], [0, 0, 1, 1], [], []>} : vector<8x32xf32>, vector<32x32xf32>, vector<8x32xf32> -> vector<8x32xf32>
    %c0_9 = arith.constant 0 : index
    %c0_10 = arith.constant 0 : index
    %10 = vector.load %arg5[%c0_9, %c0_10] : memref<1x32xf32, #tpu.memory_space<vmem>>, vector<1x32xf32>
    %11 = vector.broadcast %10 : vector<1x32xf32> to vector<8x32xf32>
    %12 = arith.addf %9, %11 : vector<8x32xf32>
    %c0_11 = arith.constant 0 : index
    %c0_12 = arith.constant 0 : index
    %13 = vector.load %arg6[%c0_11, %c0_12] : memref<8x32xf32, #tpu.memory_space<vmem>>, vector<8x32xf32>
    tpu.vector_store %arg6[%c0_11, %c0_12], %12 {strides = array<i32>} : memref<8x32xf32, #tpu.memory_space<vmem>>, vector<8x32xf32>,
    return
  }
  func.func @transform_0(%arg0: i32) -> (i32, i32) {
    %c0_i32 = arith.constant 0 : i32
    %c0_i32_0 = arith.constant 0 : i32
    %c0_i32_1 = arith.constant 0 : i32
    return %c0_i32, %c0_i32_0 : i32, i32
  }
  func.func @transform_1(%arg0: i32) -> (i32, i32) {
    %c0_i32 = arith.constant 0 : i32
    %c0_i32_0 = arith.constant 0 : i32
    %c0_i32_1 = arith.constant 0 : i32
    return %c0_i32, %c0_i32_0 : i32, i32
  }
  func.func @transform_2(%arg0: i32) -> (i32, i32) {
    %c0_i32 = arith.constant 0 : i32
    %c0_i32_0 = arith.constant 0 : i32
    %c0_i32_1 = arith.constant 0 : i32
    return %c0_i32, %c0_i32_0 : i32, i32
  }
  func.func @transform_3(%arg0: i32) -> (i32, i32) {
    %c0_i32 = arith.constant 0 : i32
    %c0_i32_0 = arith.constant 0 : i32
    %c0_i32_1 = arith.constant 0 : i32
    return %c0_i32, %c0_i32_0 : i32, i32
  }
  func.func @transform_4(%arg0: i32) -> (i32, i32) {
    %c0_i32 = arith.constant 0 : i32
    %c0_i32_0 = arith.constant 0 : i32
    %c0_i32_1 = arith.constant 0 : i32
    return %c0_i32, %c0_i32_0 : i32, i32
  }
  func.func @transform_5(%arg0: i32) -> (i32, i32) {
    %c0_i32 = arith.constant 0 : i32
    %c0_i32_0 = arith.constant 0 : i32
    %c0_i32_1 = arith.constant 0 : i32
    return %c0_i32, %c0_i32_0 : i32, i32
  }
}

</mosaic_0001>

<llo_original>
// kernel: joint_to_person.1
$region0: #{joint_to_person.1}
  #allocation0 [shape = 'u32[]', space=smem, size = 0x4, offset = 0x4, fixed_abs, tag = 'smem constant byte address 0x4 - core index']
  #allocation1 [shape = 'u32[144,128]{1,0:T(1,128)}', space=vmem, size = 0x12000, scoped, tag = 'internal scratch']
  %s0 = inlined_call_operand.vmem [shape: f32[8,128], index: 0, kind: input, shape index: {}]
  %s1 = inlined_call_operand.hbm [shape: f32[128,32], index: 1, kind: input, shape index: {}]
  %s2 = inlined_call_operand.vmem [shape: f32[1,32], index: 2, kind: input, shape index: {}]
  %s3 = inlined_call_operand.vmem [shape: f32[32,32], index: 3, kind: input, shape index: {}]
  %s4 = inlined_call_operand.vmem [shape: f32[1,32], index: 4, kind: input, shape index: {}]
  %s5 = inlined_call_operand.hbm [shape: f32[8,32], index: 5, kind: output, shape index: {}]
  %s6 = sld [smem:[#allocation0]]
  $region34: #{joint_to_person.1} parent=0
    _
  %s8 = ssub.s32 1, %s6
  %s9 = scalar_select 0, %s8, %s6
  $region1: #{joint_to_person.1} parent=0
    #allocation2 [shape = 'u8[65536]{0}', space=vmem, size = 0x10000, scoped, tag = 'input window, operand 1, single buffered']
    #allocation3 [shape = 's32[1]{0}', space=sflag, size = 0x4, scoped, tag = 'scoped memory for joint_to_person.1']
    #allocation4 [shape = 's32[1]{0}', space=sflag, size = 0x4, scoped, tag = 'scoped memory for joint_to_person.1']
    #allocation5 [shape = 'u8[4096]{0}', space=vmem, size = 0x1000, scoped, tag = 'output window, operand 0, single buffered']
    %10 = vsyncpa [#allocation3], 0
    %11 = vsyncpa [#allocation4], 0
    // Predicated region
    $region2: #{joint_to_person.1} parent=1 // pred_check
      _
    $region3: #{joint_to_person.1} parent=1 // pred_check_branch
      %13 = sbr.rel (0) target = $region5
    $region4: #{joint_to_person.1} parent=1 // pred_region
      _
    $region5: #{joint_to_person.1} parent=1 // pred_fallthru
      _
    // Predicated region
    $region6: #{joint_to_person.1} parent=1 // pred_check
      _
    $region7: #{joint_to_person.1} parent=1 // pred_check_branch
      %15 = sbr.rel (0) target = $region9
    $region8: #{joint_to_person.1} parent=1 // pred_region
      %s17 = ssub.s32 2048, 2048
      %18 = vsyncadd [#allocation3], %s17
      %s19 = sshll.u32 [#allocation2], 4
      %s20 = int_to_ptr.vmem [resolvable:$true] %s19
      %25 = dma.hbm_to_vmem [thread:$0]  %s1, 2048, %s20, [#allocation3], 128, 128, 8
    $region9: #{joint_to_person.1} parent=1 // pred_fallthru
      _
    // Predicated region
    $region10: #{joint_to_person.1} parent=1 // pred_check
      _
    $region11: #{joint_to_person.1} parent=1 // pred_check_branch
      %27 = sbr.rel (0) target = $region13
    $region12: #{joint_to_person.1} parent=1 // pred_region
      _
    $region13: #{joint_to_person.1} parent=1 // pred_fallthru
      _
    // Predicated region
    $region14: #{joint_to_person.1} parent=1 // pred_check
      _
    $region15: #{joint_to_person.1} parent=1 // pred_check_branch
      %29 = sbr.rel (0) target = $region17
    $region16: #{joint_to_person.1} parent=1 // pred_region
      _
    $region17: #{joint_to_person.1} parent=1 // pred_fallthru
      _
    // Predicated region
    $region18: #{joint_to_person.1} parent=1 // pred_check
      _
    $region19: #{joint_to_person.1} parent=1 // pred_check_branch
      %31 = sbr.rel (0) target = $region21
    $region20: #{joint_to_person.1} parent=1 // pred_region
      _
    $region21: #{joint_to_person.1} parent=1 // pred_fallthru
      _
    // Predicated region
    $region22: #{joint_to_person.1} parent=1 // pred_check
      _
    $region23: #{joint_to_person.1} parent=1 // pred_check_branch
      %33 = sbr.rel (0) target = $region25
    $region24: #{joint_to_person.1} parent=1 // pred_region
      %34 = dma.done [#allocation3], 2048
    $region25: #{joint_to_person.1} parent=1 // pred_fallthru
      _
    %v35 = vld [vmem:[%s0] sm:$0xff]
    %v36 = vld [vmem:[#allocation2] sm:$0xff]
    %v37 = vld [vmem:[#allocation2 + $0x8] sm:$0xff]
    %v38 = vld [vmem:[#allocation2 + $0x10] sm:$0xff]
    %v39 = vld [vmem:[#allocation2 + $0x18] sm:$0xff]
    %v40 = vld [vmem:[#allocation2 + $0x20] sm:$0xff]
    %v41 = vld [vmem:[#allocation2 + $0x28] sm:$0xff]
    %v42 = vld [vmem:[#allocation2 + $0x30] sm:$0xff]
    %v43 = vld [vmem:[#allocation2 + $0x38] sm:$0xff]
    %v44 = vld [vmem:[#allocation2 + $0x40] sm:$0xff]
    %v45 = vld [vmem:[#allocation2 + $0x48] sm:$0xff]
    %v46 = vld [vmem:[#allocation2 + $0x50] sm:$0xff]
    %v47 = vld [vmem:[#allocation2 + $0x58] sm:$0xff]
    %v48 = vld [vmem:[#allocation2 + $0x60] sm:$0xff]
    %v49 = vld [vmem:[#allocation2 + $0x68] sm:$0xff]
    %v50 = vld [vmem:[#allocation2 + $0x70] sm:$0xff]
    %v51 = vld [vmem:[#allocation2 + $0x78] sm:$0xff]
    %v52 = vld [vmem:[%s2] sm:$0x1]
    %v54 = vlaneseq
    %v55 = vshrl.u32 %v54, 7
    %v56 = vsub.s32 0, %v55
    %v57 = vrot.slane %v52, %v56
    %59 = vmatprep.subr.mxu0 0.0
    %60 = vmatpush1.msra.mxu0 %v51
    %61 = vmatprep.subr.mxu0 0.0
    %62 = vmatpush1.msra.mxu0 %v50
    %63 = vmatprep.subr.mxu0 0.0
    %64 = vmatpush1.msra.mxu0 %v49
    %65 = vmatprep.subr.mxu0 0.0
    %66 = vmatpush1.msra.mxu0 %v48
    %67 = vmatprep.subr.mxu0 0.0
    %68 = vmatpush1.msra.mxu0 %v47
    %69 = vmatprep.subr.mxu0 0.0
    %70 = vmatpush1.msra.mxu0 %v46
    %71 = vmatprep.subr.mxu0 0.0
    %72 = vmatpush1.msra.mxu0 %v45
    %73 = vmatprep.subr.mxu0 0.0
    %74 = vmatpush1.msra.mxu0 %v44
    %75 = vmatprep.subr.mxu0 0.0
    %76 = vmatpush1.msra.mxu0 %v43
    %77 = vmatprep.subr.mxu0 0.0
    %78 = vmatpush1.msra.mxu0 %v42
    %79 = vmatprep.subr.mxu0 0.0
    %80 = vmatpush1.msra.mxu0 %v41
    %81 = vmatprep.subr.mxu0 0.0
    %82 = vmatpush1.msra.mxu0 %v40
    %83 = vmatprep.subr.mxu0 0.0
    %84 = vmatpush1.msra.mxu0 %v39
    %85 = vmatprep.subr.mxu0 0.0
    %86 = vmatpush1.msra.mxu0 %v38
    %87 = vmatprep.subr.mxu0 0.0
    %88 = vmatpush1.msra.mxu0 %v37
    %89 = vmatprep.subr.mxu0 0.0
    %90 = vmatpush1.msra.mxu0 %v36
    %91 = vmatprep.subr.mxu0 0.0
    %92 = vmatpush2.msra.mxu0 0.0
    %93 = vmatprep.subr.mxu0 0.0
    %94 = vmatpush2.msra.mxu0 0.0
    %95 = vmatprep.subr.mxu0 0.0
    %96 = vmatpush2.msra.mxu0 0.0
    %97 = vmatprep.subr.mxu0 0.0
    %98 = vmatpush2.msra.mxu0 0.0
    %99 = vmatprep.subr.mxu0 0.0
    %100 = vmatpush2.msra.mxu0 0.0
    %101 = vmatprep.subr.mxu0 0.0
    %102 = vmatpush2.msra.mxu0 0.0
    %103 = vmatprep.subr.mxu0 0.0
    %104 = vmatpush2.msra.mxu0 0.0
    %105 = vmatprep.subr.mxu0 0.0
    %106 = vmatpush2.msra.mxu0 0.0
    %107 = vmatprep.subr.mxu0 0.0
    %108 = vmatpush2.msra.mxu0 0.0
    %109 = vmatprep.subr.mxu0 0.0
    %110 = vmatpush2.msra.mxu0 0.0
    %111 = vmatprep.subr.mxu0 0.0
    %112 = vmatpush2.msra.mxu0 0.0
    %113 = vmatprep.subr.mxu0 0.0
    %114 = vmatpush2.msra.mxu0 0.0
    %115 = vmatprep.subr.mxu0 0.0
    %116 = vmatpush2.msra.mxu0 0.0
    %117 = vmatprep.subr.mxu0 0.0
    %118 = vmatpush2.msra.mxu0 0.0
    %119 = vmatprep.subr.mxu0 0.0
    %120 = vmatpush2.msra.mxu0 0.0
    %121 = vmatprep.subr.mxu0 0.0
    %122 = vmatpush2.msra.mxu0 0.0
    %123 = vmatprep.mubr.f32.mxu0 0.0
    %124 = vmatmul.mubr.f32.gmra.mxu0 %v35
    %v125 = vpop.f32.mrf.mxu0
    %v126 = vadd.f32 %v57, %v125
    %v127 = vpop.f32.mrf.mxu0
    %128 = vdwg.mxu0
    %v129 = vmax.f32 %v126, 0.0
    %v130 = vld [vmem:[%s3] sm:$0xff]
    %v131 = vld [vmem:[%s3 + $0x8] sm:$0xff]
    %v132 = vld [vmem:[%s3 + $0x10] sm:$0xff]
    %v133 = vld [vmem:[%s3 + $0x18] sm:$0xff]
    %v134 = vld [vmem:[%s4] sm:$0x1]
    %v136 = vlaneseq
    %v137 = vshrl.u32 %v136, 7
    %v138 = vsub.s32 0, %v137
    %v139 = vrot.slane %v134, %v138
    %vm141 = vcmask 261120
    %v143 = vsel %vm141, %v129, 0
    %145 = vmatprep.subr.mxu0 0.0
    %146 = vmatpush1.msra.mxu0 0.0
    %147 = vmatprep.subr.mxu0 0.0
    %148 = vmatpush1.msra.mxu0 0.0
    %149 = vmatprep.subr.mxu0 0.0
    %150 = vmatpush1.msra.mxu0 0.0
    %151 = vmatprep.subr.mxu0 0.0
    %152 = vmatpush1.msra.mxu0 0.0
    %153 = vmatprep.subr.mxu0 0.0
    %154 = vmatpush1.msra.mxu0 0.0
    %155 = vmatprep.subr.mxu0 0.0
    %156 = vmatpush1.msra.mxu0 0.0
    %157 = vmatprep.subr.mxu0 0.0
    %158 = vmatpush1.msra.mxu0 0.0
    %159 = vmatprep.subr.mxu0 0.0
    %160 = vmatpush1.msra.mxu0 0.0
    %161 = vmatprep.subr.mxu0 0.0
    %162 = vmatpush1.msra.mxu0 0.0
    %163 = vmatprep.subr.mxu0 0.0
    %164 = vmatpush1.msra.mxu0 0.0
    %165 = vmatprep.subr.mxu0 0.0
    %166 = vmatpush1.msra.mxu0 0.0
    %167 = vmatprep.subr.mxu0 0.0
    %168 = vmatpush1.msra.mxu0 0.0
    %169 = vmatprep.subr.mxu0 0.0
    %170 = vmatpush1.msra.mxu0 %v133
    %171 = vmatprep.subr.mxu0 0.0
    %172 = vmatpush1.msra.mxu0 %v132
    %173 = vmatprep.subr.mxu0 0.0
    %174 = vmatpush1.msra.mxu0 %v131
    %175 = vmatprep.subr.mxu0 0.0
    %176 = vmatpush1.msra.mxu0 %v130
    %177 = vmatprep.subr.mxu0 0.0
    %178 = vmatpush2.msra.mxu0 0.0
    %179 = vmatprep.subr.mxu0 0.0
    %180 = vmatpush2.msra.mxu0 0.0
    %181 = vmatprep.subr.mxu0 0.0
    %182 = vmatpush2.msra.mxu0 0.0
    %183 = vmatprep.subr.mxu0 0.0
    %184 = vmatpush2.msra.mxu0 0.0
    %185 = vmatprep.subr.mxu0 0.0
    %186 = vmatpush2.msra.mxu0 0.0
    %187 = vmatprep.subr.mxu0 0.0
    %188 = vmatpush2.msra.mxu0 0.0
    %189 = vmatprep.subr.mxu0 0.0
    %190 = vmatpush2.msra.mxu0 0.0
    %191 = vmatprep.subr.mxu0 0.0
    %192 = vmatpush2.msra.mxu0 0.0
    %193 = vmatprep.subr.mxu0 0.0
    %194 = vmatpush2.msra.mxu0 0.0
    %195 = vmatprep.subr.mxu0 0.0
    %196 = vmatpush2.msra.mxu0 0.0
    %197 = vmatprep.subr.mxu0 0.0
    %198 = vmatpush2.msra.mxu0 0.0
    %199 = vmatprep.subr.mxu0 0.0
    %200 = vmatpush2.msra.mxu0 0.0
    %201 = vmatprep.subr.mxu0 0.0
    %202 = vmatpush2.msra.mxu0 0.0
    %203 = vmatprep.subr.mxu0 0.0
    %204 = vmatpush2.msra.mxu0 0.0
    %205 = vmatprep.subr.mxu0 0.0
    %206 = vmatpush2.msra.mxu0 0.0
    %207 = vmatprep.subr.mxu0 0.0
    %208 = vmatpush2.msra.mxu0 0.0
    %209 = vmatprep.mubr.f32.mxu0 0.0
    %210 = vmatmul.mubr.f32.gmra.mxu0 %v143
    %v211 = vpop.f32.mrf.mxu0
    %v212 = vadd.f32 %v139, %v211
    %v213 = vpop.f32.mrf.mxu0
    %214 = vdwg.mxu0
    %215 = vst.msk [vmem:[#allocation5] sm:$0xff] %vm141, %v212
    // Predicated region
    $region26: #{joint_to_person.1} parent=1 // pred_check
      _
    $region27: #{joint_to_person.1} parent=1 // pred_check_branch
      %217 = sbr.rel (0) target = $region29
    $region28: #{joint_to_person.1} parent=1 // pred_region
      %s219 = ssub.s32 128, 128
      %220 = vsyncadd [#allocation4], %s219
      %s222 = sshll.u32 [#allocation5], 4
      %s223 = int_to_ptr.vmem [resolvable:$true] %s222
      %225 = dma.vmem_to_hbm [thread:$0]  %s223, 128, %s5, [#allocation4]
    $region29: #{joint_to_person.1} parent=1 // pred_fallthru
      _
    // Predicated region
    $region30: #{joint_to_person.1} parent=1 // pred_check
      _
    $region31: #{joint_to_person.1} parent=1 // pred_check_branch
      %227 = sbr.rel (0) target = $region33
    $region32: #{joint_to_person.1} parent=1 // pred_region
      %228 = dma.done [#allocation4], 128
    $region33: #{joint_to_person.1} parent=1 // pred_fallthru
      _
    %229 = vsyncpa [#allocation3], 1
    %230 = vsyncpa [#allocation4], 1

</llo_original>
